<compile_context>
chip_gen: v5e
topology: v5e:2x2
jax: 0.10.0
libtpu: 0.0.40
codegen_flags: <defaults>
</compile_context>

<pallas_src>
import functools
import math

import jax
import jax.numpy as jnp
from jax import lax
from jax.experimental import pallas as pl
from jax.experimental.pallas import tpu as pltpu


def _round_up(x: int, m: int) -> int:
    return ((x + m - 1) // m) * m


def _vmem_capacity_bytes() -> int:
    try:
        return int(pltpu.get_tpu_info().vmem_capacity_bytes)
    except Exception:  # pragma: no cover - conservative fallback (v7x figure)
        return 64 * 1024 * 1024


def _choose_tiling(seq_len: int, tq_pref: int):
    """Pick (TQ, S_pad), preferring no padding (=> no post-kernel slice copy)."""
    for cand in (256, 128, 64, 32, 16):
        if cand <= tq_pref and seq_len % cand == 0:
            return cand, seq_len
    if seq_len <= tq_pref:          # small ragged S: one full-size tile, no pad
        return seq_len, seq_len
    tq = min(tq_pref, 128)          # large ragged S: pad to a tile multiple
    return tq, _round_up(seq_len, tq)


def _span_attention_kernel(x_ref, wq_ref, bq_ref, wk_ref, bk_ref, *rest,
                           tq: int, ck: int, num_k_chunks: int, padded: bool):
    if padded:
        mask_ref, o_ref, k_scratch = rest
    else:
        mask_ref = None
        o_ref, k_scratch = rest

    q_idx = pl.program_id(1)

    # ---- K projection: once per batch element, in TQ-row chunks so the f32
    #      intermediate is (ck, H) instead of (S_pad, H). ----
    @pl.when(q_idx == 0)
    def _():
        @pl.loop(0, num_k_chunks)
        def _(c):
            off = pl.multiple_of(c * ck, ck)
            xc = x_ref[0, pl.ds(off, ck), :]                      # (ck, H) bf16
            kc = jnp.dot(xc, wk_ref[...],
                         preferred_element_type=jnp.float32)      # (ck, H) f32
            kc = kc + bk_ref[...]
            k_scratch[pl.ds(off, ck), :] = kc.astype(k_scratch.dtype)

    # ---- Per step: project just this query tile (1/sqrt(H) folded into wq). ----
    q_off = pl.multiple_of(q_idx * tq, tq)
    xq = x_ref[0, pl.ds(q_off, tq), :]                            # (TQ, H) bf16
    q = jnp.dot(xq, wq_ref[...], preferred_element_type=jnp.float32) + bq_ref[...]
    q = q.astype(jnp.bfloat16)

    # scores = Q @ K^T, contracting on H (no materialized transpose of K).
    scores = lax.dot_general(q, k_scratch[...],
                             dimension_numbers=(((1,), (1,)), ((), ())),
                             preferred_element_type=jnp.float32)  # (TQ, S_pad)
    if padded:
        scores = scores + mask_ref[...]     # additive {0, -BIG} key mask row

    m = jnp.max(scores, axis=-1, keepdims=True)
    e = jnp.exp(scores - m)
    denom = jnp.sum(e, axis=-1, keepdims=True)
    probs = e * pl.reciprocal(denom, approx=True)
    o_ref[0] = probs.astype(o_ref.dtype)


def span_attention(hidden_states, wq, bq, wk, bk, *,
                   tq: int | None = None, out_dtype=jnp.bfloat16):
    """hidden_states: [B, S, H]; wq/wk: [H, H] (PyTorch [out, in]); bq/bk: [H].

    Returns softmax(Q K^T / sqrt(H)) with shape [B, S, S] in `out_dtype`
    (bf16 by default: the kernel is HBM-write-bound, bf16 halves the traffic).
    """
    B, S, H = hidden_states.shape
    scale = 1.0 / math.sqrt(H)

    vmem_cap = _vmem_capacity_bytes()
    if tq is None:
        # 128 MiB VMEM chips (v5e/v6e) take bigger query tiles; v7x (64 MiB) 128.
        tq = 256 if vmem_cap >= 100 * 1024 * 1024 else 128

    TQ, S_pad = _choose_tiling(S, tq)
    padded = S_pad != S
    num_q_tiles = S_pad // TQ

    # bf16 MXU operands (f32 accumulation in-kernel); scale folded into Q side.
    wq_s = (wq.T * scale).astype(jnp.bfloat16)                    # (H, H)
    wk_t = wk.T.astype(jnp.bfloat16)                              # (H, H)
    bq_s = (bq * scale).reshape(1, H).astype(jnp.float32)
    bk_r = bk.reshape(1, H).astype(jnp.float32)

    x = hidden_states.astype(jnp.bfloat16)
    if padded:
        x = jnp.pad(x, ((0, 0), (0, S_pad - S), (0, 0)))

    inputs = [x, wq_s, bq_s, wk_t, bk_r]
    in_specs = [
        # Full (padded) sequence for this batch element; block index changes
        # only with b, so it is DMA'd once per batch element.
        pl.BlockSpec((1, S_pad, H), lambda b, q: (b, 0, 0)),
        # Whole-array VMEM residents (single-buffered, no per-step DMA).
        pl.BlockSpec(memory_space=pltpu.MemorySpace.VMEM),
        pl.BlockSpec(memory_space=pltpu.MemorySpace.VMEM),
        pl.BlockSpec(memory_space=pltpu.MemorySpace.VMEM),
        pl.BlockSpec(memory_space=pltpu.MemorySpace.VMEM),
    ]
    if padded:
        mask = jnp.where(jnp.arange(S_pad) < S, 0.0, -1e30)
        mask = mask.reshape(1, S_pad).astype(jnp.float32)
        inputs.append(mask)
        in_specs.append(pl.BlockSpec(memory_space=pltpu.MemorySpace.VMEM))

    kernel = functools.partial(_span_attention_kernel, tq=TQ, ck=TQ,
                               num_k_chunks=num_q_tiles, padded=padded)

    out_bytes = jnp.dtype(out_dtype).itemsize
    # Peak-VMEM estimate -> vmem limit (headroom below physical capacity).
    vmem_est = (
        2 * S_pad * H * 2              # x block, double-buffered bf16
        + 2 * H * H * 2 + 4 * H * 4    # weights (single copy) + biases
        + S_pad * 4                    # key mask
        + 2 * TQ * S_pad * out_bytes   # output block, double-buffered
        + S_pad * H * 2                # K scratch (bf16)
        + 4 * TQ * S_pad * 4           # f32 softmax temporaries
        + 2 * TQ * H * 4               # projection temporaries
    )
    vmem_limit = int(min(max(vmem_est * 5 // 4 + (2 << 20), 16 << 20),
                         vmem_cap - (4 << 20), 100 << 20))

    cost = pl.CostEstimate(
        flops=int(2 * B * S_pad * S_pad * H + 4 * B * S_pad * H * H),
        transcendentals=int(B * S_pad * S_pad),
        bytes_accessed=int(B * S_pad * H * 2 + 2 * H * H * 2
                           + B * S_pad * S_pad * out_bytes),
    )

    out = pl.pallas_call(
        kernel,
        out_shape=jax.ShapeDtypeStruct((B, S_pad, S_pad), out_dtype),
        grid_spec=pltpu.PrefetchScalarGridSpec(
            num_scalar_prefetch=0,
            grid=(B, num_q_tiles),
            in_specs=in_specs,
            out_specs=pl.BlockSpec((1, TQ, S_pad), lambda b, q: (b, q, 0)),
            scratch_shapes=[pltpu.VMEM((S_pad, H), jnp.bfloat16)],   # K
        ),
        compiler_params=pltpu.CompilerParams(
            # K scratch is reused across q tiles of one batch element, so the
            # q axis must stay "arbitrary"; the batch axis can feed both TCs.
            dimension_semantics=("parallel", "arbitrary"),
            vmem_limit_bytes=vmem_limit,
        ),
        cost_estimate=cost,
    )(*inputs)

    if padded:
        # Only hit for ragged S with no tile-sized divisor (extra HBM pass).
        out = out[:, :S, :S]
    return out


def span_attention_ref(hidden_states, wq, bq, wk, bk):
    """Pure-JAX f32 reference matching the PyTorch forward."""
    H = hidden_states.shape[-1]
    q = hidden_states @ wq.T + bq
    k = hidden_states @ wk.T + bk
    scores = jnp.einsum("bsh,bth->bst", q, k) / math.sqrt(H)
    return jax.nn.softmax(scores, axis=-1)


if __name__ == "__main__":
    B, S, H = 2, 8, 32

    key = jax.random.PRNGKey(0)
    k_x, k_wq, k_bq, k_wk, k_bk = jax.random.split(key, 5)

    hidden_states = jax.random.normal(k_x, (B, S, H), dtype=jnp.float32)

    # Deterministic parameter init mimicking nn.Linear's U(-1/sqrt(H), 1/sqrt(H)).
    bound = 1.0 / math.sqrt(H)
    wq = jax.random.uniform(k_wq, (H, H), minval=-bound, maxval=bound, dtype=jnp.float32)
    bq = jax.random.uniform(k_bq, (H,), minval=-bound, maxval=bound, dtype=jnp.float32)
    wk = jax.random.uniform(k_wk, (H, H), minval=-bound, maxval=bound, dtype=jnp.float32)
    bk = jax.random.uniform(k_bk, (H,), minval=-bound, maxval=bound, dtype=jnp.float32)

    out = span_attention(hidden_states, wq, bq, wk, bk)
    out = jax.block_until_ready(out)

    ref = span_attention_ref(hidden_states, wq, bq, wk, bk)
    assert out.shape == (B, S, S), out.shape
    out_f32 = out.astype(jnp.float32)
    # bf16 MXU operands + bf16 output + approx reciprocal -> loose tolerance.
    assert jnp.allclose(out_f32, ref, atol=2e-2, rtol=2e-2), "mismatch vs reference"
    # Softmax rows must still sum to ~1 (bf16 output + approx reciprocal slack).
    assert jnp.allclose(out_f32.sum(-1), 1.0, atol=1e-2), "row sums off"

    print("KERNEL_OK")
</pallas_src>

<mosaic_0001>
module attributes {stable_mosaic.version = 11 : i64} {
  func.func @_span_attention_kernel(%arg0: i32, %arg1: i32, %arg2: memref<1x8x32xbf16, #tpu.memory_space<vmem>>, %arg3: memref<32x32xbf16, #tpu.memory_space<vmem>>, %arg4: memref<1x32xf32, #tpu.memory_space<vmem>>, %arg5: memref<32x32xbf16, #tpu.memory_space<vmem>>, %arg6: memref<1x32xf32, #tpu.memory_space<vmem>>, %arg7: memref<1x8x8xbf16, #tpu.memory_space<vmem>>, %arg8: memref<8x32xbf16, #tpu.memory_space<vmem>>) attributes {dimension_semantics = [#tpu.dimension_semantics<parallel>, #tpu.dimension_semantics<arbitrary>], iteration_bounds = array<i64: 2, 1>, scalar_prefetch = 0 : i64, scratch_operands = 1 : i64, tpu.core_type = #tpu.core_type<tc>, window_params = [{transform_indices = @transform_0, window_bounds = array<i64: 1, 8, 32>}, {pipeline_mode = #tpu.pipeline_mode<synchronous>, transform_indices = @transform_1, window_bounds = array<i64: 32, 32>}, {pipeline_mode = #tpu.pipeline_mode<synchronous>, transform_indices = @transform_2, window_bounds = array<i64: 1, 32>}, {pipeline_mode = #tpu.pipeline_mode<synchronous>, transform_indices = @transform_3, window_bounds = array<i64: 32, 32>}, {pipeline_mode = #tpu.pipeline_mode<synchronous>, transform_indices = @transform_4, window_bounds = array<i64: 1, 32>}, {transform_indices = @transform_5, window_bounds = array<i64: 1, 8, 8>}]} {
    %c0_i32 = arith.constant 0 : i32
    %0 = arith.cmpi eq, %arg1, %c0_i32 : i32
    %1 = arith.extui %0 : i1 to i32
    %c0_i32_0 = arith.constant 0 : i32
    %2 = arith.cmpi ne, %1, %c0_i32_0 : i32
    scf.if %2 {
      %c0_i32_14 = arith.constant 0 : i32
      %c1_i32 = arith.constant 1 : i32
      %30 = arith.muli %c0_i32_14, %c1_i32 : i32
      %c0_i32_15 = arith.constant 0 : i32
      %31 = arith.addi %c0_i32_15, %30 : i32
      %c8_i32_16 = arith.constant 8 : i32
      %32 = arith.muli %31, %c8_i32_16 : i32
      %33 = tpu.assume_multiple %32, 8 : i32
      %c0_17 = arith.constant 0 : index
      %34 = arith.index_cast %33 : i32 to index
      %c0_18 = arith.constant 0 : index
      %35 = vector.load %arg2[%c0_17, %34, %c0_18] : memref<1x8x32xbf16, #tpu.memory_space<vmem>>, vector<1x8x32xbf16>
      %36 = vector.shape_cast %35 : vector<1x8x32xbf16> to vector<8x32xbf16>
      %c0_19 = arith.constant 0 : index
      %c0_20 = arith.constant 0 : index
      %37 = vector.load %arg5[%c0_19, %c0_20] : memref<32x32xbf16, #tpu.memory_space<vmem>>, vector<32x32xbf16>
      %cst_21 = arith.constant dense<0.000000e+00> : vector<8x32xf32>
      %38 = tpu.matmul %36, %37, %cst_21 {dimension_numbers = #tpu.dot_dimension_numbers<[1], [0], [0], [1], [0, 0, 1, 1], [], []>} : vector<8x32xbf16>, vector<32x32xbf16>, vector<8x32xf32> -> vector<8x32xf32>
      %c0_22 = arith.constant 0 : index
      %c0_23 = arith.constant 0 : index
      %39 = vector.load %arg6[%c0_22, %c0_23] : memref<1x32xf32, #tpu.memory_space<vmem>>, vector<1x32xf32>
      %40 = vector.broadcast %39 : vector<1x32xf32> to vector<8x32xf32>
      %41 = arith.addf %38, %40 : vector<8x32xf32>
      %42 = arith.truncf %41 : vector<8x32xf32> to vector<8x32xbf16>
      %43 = arith.index_cast %33 : i32 to index
      %c0_24 = arith.constant 0 : index
      %44 = vector.load %arg8[%43, %c0_24] : memref<8x32xbf16, #tpu.memory_space<vmem>>, vector<8x32xbf16>
      tpu.vector_store %arg8[%43, %c0_24], %42 {strides = array<i32>} : memref<8x32xbf16, #tpu.memory_space<vmem>>, vector<8x32xbf16>,
      %c1_i32_25 = arith.constant 1 : i32
    } else {
    }
    %c8_i32 = arith.constant 8 : i32
    %3 = arith.muli %arg1, %c8_i32 : i32
    %4 = tpu.assume_multiple %3, 8 : i32
    %c0 = arith.constant 0 : index
    %5 = arith.index_cast %4 : i32 to index
    %c0_1 = arith.constant 0 : index
    %6 = vector.load %arg2[%c0, %5, %c0_1] : memref<1x8x32xbf16, #tpu.memory_space<vmem>>, vector<1x8x32xbf16>
    %7 = vector.shape_cast %6 : vector<1x8x32xbf16> to vector<8x32xbf16>
    %c0_2 = arith.constant 0 : index
    %c0_3 = arith.constant 0 : index
    %8 = vector.load %arg3[%c0_2, %c0_3] : memref<32x32xbf16, #tpu.memory_space<vmem>>, vector<32x32xbf16>
    %cst = arith.constant dense<0.000000e+00> : vector<8x32xf32>
    %9 = tpu.matmul %7, %8, %cst {dimension_numbers = #tpu.dot_dimension_numbers<[1], [0], [0], [1], [0, 0, 1, 1], [], []>} : vector<8x32xbf16>, vector<32x32xbf16>, vector<8x32xf32> -> vector<8x32xf32>
    %c0_4 = arith.constant 0 : index
    %c0_5 = arith.constant 0 : index
    %10 = vector.load %arg4[%c0_4, %c0_5] : memref<1x32xf32, #tpu.memory_space<vmem>>, vector<1x32xf32>
    %11 = vector.broadcast %10 : vector<1x32xf32> to vector<8x32xf32>
    %12 = arith.addf %9, %11 : vector<8x32xf32>
    %13 = arith.truncf %12 : vector<8x32xf32> to vector<8x32xbf16>
    %c0_6 = arith.constant 0 : index
    %c0_7 = arith.constant 0 : index
    %14 = vector.load %arg8[%c0_6, %c0_7] : memref<8x32xbf16, #tpu.memory_space<vmem>>, vector<8x32xbf16>
    %cst_8 = arith.constant dense<0.000000e+00> : vector<8x8xf32>
    %15 = tpu.matmul %13, %14, %cst_8 {dimension_numbers = #tpu.dot_dimension_numbers<[1], [1], [0], [0], [0, 0, 1, 0], [], []>} : vector<8x32xbf16>, vector<8x32xbf16>, vector<8x8xf32> -> vector<8x8xf32>
    %cst_9 = arith.constant dense<0xFF800000> : vector<8xf32>
    %16 = vector.multi_reduction <maximumf>, %15, %cst_9 [1] : vector<8x8xf32> to vector<8xf32>
    %17 = vector.shape_cast %16 : vector<8xf32> to vector<8x1xf32>
    %18 = vector.broadcast %17 : vector<8x1xf32> to vector<8x8xf32>
    %19 = arith.subf %15, %18 : vector<8x8xf32>
    %20 = math.exp %19 : vector<8x8xf32>
    %cst_10 = arith.constant dense<0.000000e+00> : vector<8xf32>
    %21 = vector.multi_reduction <add>, %20, %cst_10 [1] : vector<8x8xf32> to vector<8xf32>
    %22 = vector.shape_cast %21 : vector<8xf32> to vector<8x1xf32>
    %23 = tpu.reciprocal %22 {approx = true} : vector<8x1xf32> -> vector<8x1xf32>
    %24 = vector.broadcast %23 : vector<8x1xf32> to vector<8x8xf32>
    %25 = arith.mulf %20, %24 : vector<8x8xf32>
    %26 = arith.truncf %25 : vector<8x8xf32> to vector<8x8xbf16>
    %c0_11 = arith.constant 0 : index
    %c0_12 = arith.constant 0 : index
    %c0_13 = arith.constant 0 : index
    %27 = vector.load %arg7[%c0_11, %c0_12, %c0_13] : memref<1x8x8xbf16, #tpu.memory_space<vmem>>, vector<1x8x8xbf16>
    %28 = vector.shape_cast %27 : vector<1x8x8xbf16> to vector<8x8xbf16>
    %29 = vector.shape_cast %26 : vector<8x8xbf16> to vector<1x8x8xbf16>
    tpu.vector_store %arg7[%c0_11, %c0_12, %c0_13], %29 {strides = array<i32>} : memref<1x8x8xbf16, #tpu.memory_space<vmem>>, vector<1x8x8xbf16>,
    return
  }
  func.func @transform_0(%arg0: i32, %arg1: i32) -> (i32, i32, i32) {
    %c0_i32 = arith.constant 0 : i32
    %c0_i32_0 = arith.constant 0 : i32
    %c0_i32_1 = arith.constant 0 : i32
    return %arg0, %c0_i32, %c0_i32_0 : i32, i32, i32
  }
  func.func @transform_1(%arg0: i32, %arg1: i32) -> (i32, i32) {
    %c0_i32 = arith.constant 0 : i32
    %c0_i32_0 = arith.constant 0 : i32
    %c0_i32_1 = arith.constant 0 : i32
    return %c0_i32, %c0_i32_0 : i32, i32
  }
  func.func @transform_2(%arg0: i32, %arg1: i32) -> (i32, i32) {
    %c0_i32 = arith.constant 0 : i32
    %c0_i32_0 = arith.constant 0 : i32
    %c0_i32_1 = arith.constant 0 : i32
    return %c0_i32, %c0_i32_0 : i32, i32
  }
  func.func @transform_3(%arg0: i32, %arg1: i32) -> (i32, i32) {
    %c0_i32 = arith.constant 0 : i32
    %c0_i32_0 = arith.constant 0 : i32
    %c0_i32_1 = arith.constant 0 : i32
    return %c0_i32, %c0_i32_0 : i32, i32
  }
  func.func @transform_4(%arg0: i32, %arg1: i32) -> (i32, i32) {
    %c0_i32 = arith.constant 0 : i32
    %c0_i32_0 = arith.constant 0 : i32
    %c0_i32_1 = arith.constant 0 : i32
    return %c0_i32, %c0_i32_0 : i32, i32
  }
  func.func @transform_5(%arg0: i32, %arg1: i32) -> (i32, i32, i32) {
    %c0_i32 = arith.constant 0 : i32
    %c0_i32_0 = arith.constant 0 : i32
    return %arg0, %arg1, %c0_i32 : i32, i32, i32
  }
}

</mosaic_0001>

<llo_original>
// kernel: tpu_custom_call.1
$region0: #{tpu_custom_call.1}
  #allocation0 [shape = 'u32[]', space=smem, size = 0x4, offset = 0x4, fixed_abs, tag = 'smem constant byte address 0x4 - core index']
  #allocation1 [shape = 'u32[72,128]{1,0:T(1,128)}', space=vmem, size = 0x9000, scoped, tag = 'internal scratch']
  #allocation2 [shape = 'bf16[8,32]{1,0:T(8,128)(2,1)}', space=vmem, size = 0x800, scoped, tag = 'scratch operand']
  %s0 = inlined_call_operand.hbm [shape: bf16[2,8,32], index: 0, kind: input, shape index: {}]
  %s1 = inlined_call_operand.hbm [shape: bf16[32,32], index: 1, kind: input, shape index: {}]
  %s2 = inlined_call_operand.vmem [shape: f32[1,32], index: 2, kind: input, shape index: {}]
  %s3 = inlined_call_operand.hbm [shape: bf16[32,32], index: 3, kind: input, shape index: {}]
  %s4 = inlined_call_operand.vmem [shape: f32[1,32], index: 4, kind: input, shape index: {}]
  %s5 = inlined_call_operand.hbm [shape: bf16[2,8,8], index: 5, kind: output, shape index: {}]
  %s6 = sld [smem:[#allocation0]]
  $region69: #{tpu_custom_call.1} parent=0
    _
  %s8 = ssub.s32 1, %s6
  %s9 = scalar_select 0, %s8, %s6
  $region1: #{tpu_custom_call.1} parent=0
    #allocation3 [shape = 'u8[4096]{0}', space=vmem, size = 0x1000, scoped, tag = 'input window, operand 0']
    #allocation4 [shape = 's32[2]{0}', space=sflag, size = 0x8, scoped, tag = 'scoped memory for tpu_custom_call.1']
    #allocation5 [shape = 's32[2]{0}', space=sflag, size = 0x8, scoped, tag = 'scoped memory for tpu_custom_call.1']
    #allocation6 [shape = 'u8[8192]{0}', space=vmem, size = 0x2000, scoped, tag = 'input window, operand 1, single buffered']
    #allocation7 [shape = 's32[1]{0}', space=sflag, size = 0x4, scoped, tag = 'scoped memory for tpu_custom_call.1']
    #allocation8 [shape = 'u8[8192]{0}', space=vmem, size = 0x2000, scoped, tag = 'input window, operand 3, single buffered']
    #allocation9 [shape = 'u8[4096]{0}', space=vmem, size = 0x1000, scoped, tag = 'output window, operand 0']
    %10 = vsyncpa [#allocation4], 0
    %s11 = scalar_lea.sflag [#allocation4], 1
    %12 = vsyncpa %s11, 0
    %13 = vsyncpa [#allocation7], 0
    %14 = vsyncpa [#allocation5], 0
    %s15 = scalar_lea.sflag [#allocation5], 1
    %16 = vsyncpa %s15, 0
    loop: start=0, step=1, limit=4
    $region2: #{tpu_custom_call.1} parent=1 // loop_pre_header
      _
    $region3: #{tpu_custom_call.1} parent=1 // loop_header
      %s18 = sphi 0, %s22
      %p19 = scmp.ge.s32.totalorder %s18, 4
      %s25 = sphi 0, %s37
      %s26 = sphi 0, %s33
      %s27 = sphi 0, %s25
      %s28 = sphi 0, %s26
      %s29 = sphi 0, %s27
      %s30 = sphi 0, %s28
      %s40 = sphi 0, %s42
      %s43 = sphi 0, %s40
      %s44 = sphi 0, %s43
      %s60 = sphi 0, %s44
      %s64 = sphi 0, %s64
      %s66 = sphi 0, %s64
      %s67 = sphi 0, %s66
      %s81 = sphi 0, %s67
      %s85 = sphi 0, %s85
      %s87 = sphi 0, %s85
      %s88 = sphi 0, %s87
      %s102 = sphi 0, %s88
      %s106 = sphi 0, %s106
      %s108 = sphi 0, %s106
      %s109 = sphi 0, %s108
      %s123 = sphi 0, %s109
      %s127 = sphi 0, %s127
      %s129 = sphi 0, %s127
      %s130 = sphi 0, %s129
      %s144 = sphi 0, %s130
      %s152 = sphi 0, %s154
      %s155 = sphi 0, %s152
      %s156 = sphi 0, %s155
      %s172 = sphi 0, %s156
    $region4: #{tpu_custom_call.1} parent=1 // loop_header_branch
      %21 = sbr.rel (%p19) target = $region8
    $region5: #{tpu_custom_call.1} parent=1 // loop_body
      %s23 = ssub.s32 %s18, 1
      %s24 = ssub.s32 %s18, 2
      %s31 = sadd.s32 1, %s26
      %p32 = scmp.ge.s32.totalorder %s31, 1
      %s33 = scalar_select %p32, 0, %s31
      %s34 = sadd.s32 1, %s25
      %s35 = scalar_select %p32, %s34, %s25
      %p36 = scmp.ge.s32.totalorder %s35, 2
      %s37 = scalar_select %p36, 0, %s35
      %s38 = ssub.s32 %s25, %s37
      %p39 = scmp.eq.s32.totalorder %s38, 0
      %s41 = sadd.s32 %s40, 1
      %s42 = scalar_select %p39, %s40, %s41
      %p45 = pneg %p39
      %p46 = scmp.eq.s32.totalorder %s18, 1
      %p47 = por %p45, %p46
      %p48 = scmp.ne.s32.totalorder %s40, %s43
      %p49 = scmp.eq.s32.totalorder %s18, 0
      %p50 = por %p48, %p49
      %p51 = scmp.ne.s32.totalorder %s40, %s43
      %p52 = scmp.eq.s32.totalorder %s23, 1
      %p53 = por %p51, %p52
      %p54 = scmp.ne.s32.totalorder %s43, %s44
      %p55 = scmp.eq.s32.totalorder %s23, 0
      %p56 = por %p54, %p55
      %p57 = scmp.ne.s32.totalorder %s43, %s44
      %p58 = scmp.eq.s32.totalorder %s24, 1
      %p59 = por %p57, %p58
      %p61 = scmp.ne.s32.totalorder %s44, %s60
      %p62 = scmp.eq.s32.totalorder %s24, 0
      %p63 = por %p61, %p62
      %s65 = sadd.s32 %s64, 1
      %p68 = scmp.eq.s32.totalorder %s18, 1
      %p69 = scmp.ne.s32.totalorder %s64, %s66
      %p70 = scmp.eq.s32.totalorder %s18, 0
      %p71 = por %p69, %p70
      %p72 = scmp.ne.s32.totalorder %s64, %s66
      %p73 = scmp.eq.s32.totalorder %s23, 1
      %p74 = por %p72, %p73
      %p75 = scmp.ne.s32.totalorder %s66, %s67
      %p76 = scmp.eq.s32.totalorder %s23, 0
      %p77 = por %p75, %p76
      %p78 = scmp.ne.s32.totalorder %s66, %s67
      %p79 = scmp.eq.s32.totalorder %s24, 1
      %p80 = por %p78, %p79
      %p82 = scmp.ne.s32.totalorder %s67, %s81
      %p83 = scmp.eq.s32.totalorder %s24, 0
      %p84 = por %p82, %p83
      %s86 = sadd.s32 %s85, 1
      %p89 = scmp.eq.s32.totalorder %s18, 1
      %p90 = scmp.ne.s32.totalorder %s85, %s87
      %p91 = scmp.eq.s32.totalorder %s18, 0
      %p92 = por %p90, %p91
      %p93 = scmp.ne.s32.totalorder %s85, %s87
      %p94 = scmp.eq.s32.totalorder %s23, 1
      %p95 = por %p93, %p94
      %p96 = scmp.ne.s32.totalorder %s87, %s88
      %p97 = scmp.eq.s32.totalorder %s23, 0
      %p98 = por %p96, %p97
      %p99 = scmp.ne.s32.totalorder %s87, %s88
      %p100 = scmp.eq.s32.totalorder %s24, 1
      %p101 = por %p99, %p100
      %p103 = scmp.ne.s32.totalorder %s88, %s102
      %p104 = scmp.eq.s32.totalorder %s24, 0
      %p105 = por %p103, %p104
      %s107 = sadd.s32 %s106, 1
      %p110 = scmp.eq.s32.totalorder %s18, 1
      %p111 = scmp.ne.s32.totalorder %s106, %s108
      %p112 = scmp.eq.s32.totalorder %s18, 0
      %p113 = por %p111, %p112
      %p114 = scmp.ne.s32.totalorder %s106, %s108
      %p115 = scmp.eq.s32.totalorder %s23, 1
      %p116 = por %p114, %p115
      %p117 = scmp.ne.s32.totalorder %s108, %s109
      %p118 = scmp.eq.s32.totalorder %s23, 0
      %p119 = por %p117, %p118
      %p120 = scmp.ne.s32.totalorder %s108, %s109
      %p121 = scmp.eq.s32.totalorder %s24, 1
      %p122 = por %p120, %p121
      %p124 = scmp.ne.s32.totalorder %s109, %s123
      %p125 = scmp.eq.s32.totalorder %s24, 0
      %p126 = por %p124, %p125
      %s128 = sadd.s32 %s127, 1
      %p131 = scmp.eq.s32.totalorder %s18, 1
      %p132 = scmp.ne.s32.totalorder %s127, %s129
      %p133 = scmp.eq.s32.totalorder %s18, 0
      %p134 = por %p132, %p133
      %p135 = scmp.ne.s32.totalorder %s127, %s129
      %p136 = scmp.eq.s32.totalorder %s23, 1
      %p137 = por %p135, %p136
      %p138 = scmp.ne.s32.totalorder %s129, %s130
      %p139 = scmp.eq.s32.totalorder %s23, 0
      %p140 = por %p138, %p139
      %p141 = scmp.ne.s32.totalorder %s129, %s130
      %p142 = scmp.eq.s32.totalorder %s24, 1
      %p143 = por %p141, %p142
      %p145 = scmp.ne.s32.totalorder %s130, %s144
      %p146 = scmp.eq.s32.totalorder %s24, 0
      %p147 = por %p145, %p146
      %s148 = ssub.s32 %s25, %s37
      %s149 = ssub.s32 %s26, %s33
      %s150 = sor.u32 %s148, %s149
      %p151 = scmp.eq.s32.totalorder %s150, 0
      %s153 = sadd.s32 %s152, 1
      %s154 = scalar_select %p151, %s152, %s153
      %p157 = pneg %p151
      %p158 = scmp.eq.s32.totalorder %s18, 1
      %p159 = por %p157, %p158
      %p160 = scmp.ne.s32.totalorder %s152, %s155
      %p161 = scmp.eq.s32.totalorder %s18, 0
      %p162 = por %p160, %p161
      %p163 = scmp.ne.s32.totalorder %s152, %s155
      %p164 = scmp.eq.s32.totalorder %s23, 1
      %p165 = por %p163, %p164
      %p166 = scmp.ne.s32.totalorder %s155, %s156
      %p167 = scmp.eq.s32.totalorder %s23, 0
      %p168 = por %p166, %p167
      %p169 = scmp.ne.s32.totalorder %s155, %s156
      %p170 = scmp.eq.s32.totalorder %s24, 1
      %p171 = por %p169, %p170
      %p173 = scmp.ne.s32.totalorder %s156, %s172
      %p174 = scmp.eq.s32.totalorder %s24, 0
      %p175 = por %p173, %p174
      %p176 = scmp.le.s32.totalorder 1, %s18
      %p177 = scmp.lt.s32.totalorder %s18, 3
      %p178 = pnand %p176, %p177
      %p179 = pneg %p178
      // Predicated region
      $region9: #{tpu_custom_call.1} parent=5 // pred_check
        _
      $region10: #{tpu_custom_call.1} parent=5 // pred_check_branch
        %181 = sbr.rel (%p178) target = $region12
      $region11: #{tpu_custom_call.1} parent=5 // pred_region
        %s182 = ssub.s32 %s18, 1
        // Predicated region
        $region13: #{tpu_custom_call.1} parent=11 // pred_check
          %p183 = pneg %p77
        $region14: #{tpu_custom_call.1} parent=11 // pred_check_branch
          %185 = sbr.rel (%p183) target = $region16
        $region15: #{tpu_custom_call.1} parent=11 // pred_region
          %187 = vsyncadd [#allocation7], 0
          %s188 = sshll.u32 %s1, 4
          %s189 = int_to_ptr.hbm [resolvable:$true] %s188
          %s190 = sshll.u32 [#allocation6], 4
          %s191 = int_to_ptr.vmem [resolvable:$true] %s190
          %196 = dma.hbm_to_vmem [thread:$0]  %s189, 256, %s191, [#allocation7], 64, 64, 4
        $region16: #{tpu_custom_call.1} parent=11 // pred_fallthru
          _
        // Predicated region
        $region17: #{tpu_custom_call.1} parent=11 // pred_check
          %p197 = pneg %p98
        $region18: #{tpu_custom_call.1} parent=11 // pred_check_branch
          %199 = sbr.rel (%p197) target = $region20
        $region19: #{tpu_custom_call.1} parent=11 // pred_region
          _
        $region20: #{tpu_custom_call.1} parent=11 // pred_fallthru
          _
        // Predicated region
        $region21: #{tpu_custom_call.1} parent=11 // pred_check
          %p200 = pneg %p119
        $region22: #{tpu_custom_call.1} parent=11 // pred_check_branch
          %202 = sbr.rel (%p200) target = $region24
        $region23: #{tpu_custom_call.1} parent=11 // pred_region
          %204 = vsyncadd [#allocation7], 0
          %s205 = sshll.u32 %s3, 4
          %s206 = int_to_ptr.hbm [resolvable:$true] %s205
          %s207 = sshll.u32 [#allocation8], 4
          %s208 = int_to_ptr.vmem [resolvable:$true] %s207
          %213 = dma.hbm_to_vmem [thread:$0]  %s206, 256, %s208, [#allocation7], 64, 64, 4
        $region24: #{tpu_custom_call.1} parent=11 // pred_fallthru
          _
        // Predicated region
        $region25: #{tpu_custom_call.1} parent=11 // pred_check
          %p214 = pneg %p140
        $region26: #{tpu_custom_call.1} parent=11 // pred_check_branch
          %216 = sbr.rel (%p214) target = $region28
        $region27: #{tpu_custom_call.1} parent=11 // pred_region
          _
        $region28: #{tpu_custom_call.1} parent=11 // pred_fallthru
          _
      $region12: #{tpu_custom_call.1} parent=5 // pred_fallthru
        _
      %p217 = scmp.lt.s32.totalorder %s18, 2
      // Predicated region
      $region29: #{tpu_custom_call.1} parent=5 // pred_check
        %p218 = pneg %p217
      $region30: #{tpu_custom_call.1} parent=5 // pred_check_branch
        %220 = sbr.rel (%p218) target = $region32
      $region31: #{tpu_custom_call.1} parent=5 // pred_region
        // Predicated region
        $region33: #{tpu_custom_call.1} parent=31 // pred_check
          %p221 = pneg %p50
        $region34: #{tpu_custom_call.1} parent=31 // pred_check_branch
          %223 = sbr.rel (%p221) target = $region36
        $region35: #{tpu_custom_call.1} parent=31 // pred_region
          %s224 = sand.u32 %s40, 1
          %s225 = scalar_lea.sflag [#allocation4], %s224
          %s226 = sand.u32 %s40, 1
          %s227 = smul.addr %s226, 4
          %s228 = scalar_lea.vmem [#allocation3], %s227
          %230 = vsyncadd %s225, 0
          %s231 = smul.addr %s25, 4
          %s232 = scalar_lea.hbm %s0, %s231
          %s234 = sshll.u32 %s232, 4
          %s235 = int_to_ptr.hbm [resolvable:$true] %s234
          %s236 = sshll.u32 %s228, 4
          %s237 = int_to_ptr.vmem [resolvable:$true] %s236
          %239 = dma.hbm_to_vmem [thread:$0]  %s235, 64, %s237, %s225
        $region36: #{tpu_custom_call.1} parent=31 // pred_fallthru
          _
      $region32: #{tpu_custom_call.1} parent=5 // pred_fallthru
        _
      %p240 = scmp.le.s32.totalorder 1, %s18
      %p241 = scmp.lt.s32.totalorder %s18, 3
      %p242 = pnand %p240, %p241
      %p243 = pneg %p242
      // Predicated region
      $region37: #{tpu_custom_call.1} parent=5 // pred_check
        _
      $region38: #{tpu_custom_call.1} parent=5 // pred_check_branch
        %245 = sbr.rel (%p242) target = $region40
      $region39: #{tpu_custom_call.1} parent=5 // pred_region
        %s246 = ssub.s32 %s18, 1
        %s247 = sand.u32 %s43, 1
        %s248 = scalar_lea.sflag [#allocation4], %s247
        %s249 = sand.u32 %s43, 1
        %s250 = smul.addr %s249, 4
        %s251 = scalar_lea.vmem [#allocation3], %s250
        // Predicated region
        $region41: #{tpu_custom_call.1} parent=39 // pred_check
          %p252 = pneg %p56
        $region42: #{tpu_custom_call.1} parent=39 // pred_check_branch
          %254 = sbr.rel (%p252) target = $region44
        $region43: #{tpu_custom_call.1} parent=39 // pred_region
          %256 = dma.done %s248, 64
        $region44: #{tpu_custom_call.1} parent=39 // pred_fallthru
          _
        // Predicated region
        $region45: #{tpu_custom_call.1} parent=39 // pred_check
          %p257 = pneg %p77
        $region46: #{tpu_custom_call.1} parent=39 // pred_check_branch
          %259 = sbr.rel (%p257) target = $region48
        $region47: #{tpu_custom_call.1} parent=39 // pred_region
          %261 = dma.done [#allocation7], 256
        $region48: #{tpu_custom_call.1} parent=39 // pred_fallthru
          _
        // Predicated region
        $region49: #{tpu_custom_call.1} parent=39 // pred_check
          %p262 = pneg %p119
        $region50: #{tpu_custom_call.1} parent=39 // pred_check_branch
          %264 = sbr.rel (%p262) target = $region52
        $region51: #{tpu_custom_call.1} parent=39 // pred_region
          %266 = dma.done [#allocation7], 256
        $region52: #{tpu_custom_call.1} parent=39 // pred_fallthru
          _
        %s267 = sand.u32 %s43, 1
        %s268 = scalar_lea.sflag [#allocation4], %s267
        %s269 = sand.u32 %s43, 1
        %s270 = smul.addr %s269, 4
        %s271 = scalar_lea.vmem [#allocation3], %s270
        %p272 = pneg %p56
        %p273 = pneg %p53
        %p274 = pneg %p77
        %p275 = pneg %p74
        %p276 = pneg %p98
        %p277 = pneg %p95
        %p278 = pneg %p119
        %p279 = pneg %p116
        %p280 = pneg %p140
        %p281 = pneg %p137
        %p282 = pneg %p168
        %p283 = pneg %p165
        %s284 = sand.u32 %s155, 1
        %s285 = scalar_lea.sflag [#allocation5], %s284
        %s286 = sand.u32 %s155, 1
        %s287 = smul.addr %s286, 4
        %s288 = scalar_lea.vmem [#allocation9], %s287
        %p290 = scmp.eq.s32.totalorder %s28, 0
        // Predicated region
        $region53: #{tpu_custom_call.1} parent=39 // pred_check
          %p291 = pneg %p290
        $region54: #{tpu_custom_call.1} parent=39 // pred_check_branch
          %293 = sbr.rel (%p291) target = $region56
        $region55: #{tpu_custom_call.1} parent=39 // pred_region
          %v294 = vld [vmem:[%s251] sm:$0xf]
          %v295 = vld [vmem:[#allocation8] sm:$0xf]
          %v296 = vld [vmem:[#allocation8 + $0x4] sm:$0xf]
          %v297 = vld [vmem:[#allocation8 + $0x8] sm:$0xf]
          %v298 = vld [vmem:[#allocation8 + $0xc] sm:$0xf]
          %v299 = vld [vmem:[%s4] sm:$0x1]
          %v301 = vperm.slane %v299, 0
          %v307 = vunpack.c.l.b16 %v295
          %v308 = vunpack.c.l.b16 %v296
          %v309 = vunpack.c.l.b16 %v297
          %v310 = vunpack.c.l.b16 %v298
          %v311 = vpack.c.b16 %v308, %v307
          %v312 = vpack.c.b16 %v310, %v309
          %vm315 = vcmask 261120
          %v317 = vsel %vm315, %v294, 0
          %319 = vmatpush.bf16.msra.mxu0 0
          %320 = vmatpush.bf16.msra.mxu0 0
          %321 = vmatpush.bf16.msra.mxu0 0
          %322 = vmatpush.bf16.msra.mxu0 0
          %323 = vmatpush.bf16.msra.mxu0 0
          %324 = vmatpush.bf16.msra.mxu0 0
          %325 = vmatpush.bf16.msra.mxu0 %v312
          %326 = vmatpush.bf16.msra.mxu0 %v311
          %327 = vmatmul.bf16.gmra.mxu0 %v317
          %v328 = vpop.f32.mrf.mxu0
          %v329 = vadd.f32 %v301, %v328
          %v330 = vpop.f32.mrf.mxu0
          %331 = vdwg.mxu0
          %v332 = vpack.c.bf16 %v329, %v329
          %vm333 = vcmask 257024
          %334 = vst.msk [vmem:[#allocation2] sm:$0xf] %vm333, %v332
        $region56: #{tpu_custom_call.1} parent=39 // pred_fallthru
          _
        %s335 = smul.u32 %s28, 8
        %s336 = sshra.s32 %s335, 3
        %s337 = sand.u32 %s335, 7
        %s338 = smul.addr %s336, 4
        %s339 = scalar_lea.vmem %s251, %s338 [#allocation3]
        %v340 = vld [vmem:[%s339] sm:$0xf]
        %v341 = vld [vmem:[#allocation6] sm:$0xf]
        %v342 = vld [vmem:[#allocation6 + $0x4] sm:$0xf]
        %v343 = vld [vmem:[#allocation6 + $0x8] sm:$0xf]
        %v344 = vld [vmem:[#allocation6 + $0xc] sm:$0xf]
        %v345 = vld [vmem:[%s2] sm:$0x1]
        %v347 = vperm.slane %v345, 0
        %v353 = vunpack.c.l.b16 %v341
        %v354 = vunpack.c.l.b16 %v342
        %v355 = vunpack.c.l.b16 %v343
        %v356 = vunpack.c.l.b16 %v344
        %v357 = vpack.c.b16 %v354, %v353
        %v358 = vpack.c.b16 %v356, %v355
        %vm361 = vcmask 261120
        %v363 = vsel %vm361, %v340, 0
        %365 = vmatpush.bf16.msra.mxu0 0
        %366 = vmatpush.bf16.msra.mxu0 0
        %367 = vmatpush.bf16.msra.mxu0 0
        %368 = vmatpush.bf16.msra.mxu0 0
        %369 = vmatpush.bf16.msra.mxu0 0
        %370 = vmatpush.bf16.msra.mxu0 0
        %371 = vmatpush.bf16.msra.mxu0 %v358
        %372 = vmatpush.bf16.msra.mxu0 %v357
        %373 = vmatmul.bf16.gmra.mxu0 %v363
        %v374 = vpop.f32.mrf.mxu0
        %v375 = vadd.f32 %v347, %v374
        %v376 = vpop.f32.mrf.mxu0
        %377 = vdwg.mxu0
        %v378 = vpack.c.bf16 %v375, %v375
        %v379 = vld [vmem:[#allocation2] sm:$0xf]
        %v381 = vsel %vm361, %v378, 0
        %v384 = vsel %vm361, %v379, 0
        %386 = vmatpush.bf16.xpose.msra.mxu0 0
        %387 = vmatpush.bf16.xpose.msra.mxu0 0
        %388 = vmatpush.bf16.xpose.msra.mxu0 0
        %389 = vmatpush.bf16.xpose.msra.mxu0 0
        %390 = vmatpush.bf16.xpose.msra.mxu0 0
        %391 = vmatpush.bf16.xpose.msra.mxu0 0
        %392 = vmatpush.bf16.xpose.msra.mxu0 0
        %393 = vmatpush.bf16.xpose.msra.mxu0 %v384
        %394 = vmatmul.bf16.gmra.mxu0 %v381
        %v395 = vpop.f32.mrf.mxu0
        %v396 = vadd.f32 0.0, %v395
        %v397 = vpop.f32.mrf.mxu0
        %398 = vdwg.mxu0
        %vm399 = vcmask 64512
        %v400 = vsel %vm399, %v396, -inf
        %401 = vmax.xlane.f32.xlu0 %v400
        %v402 = vpop.xlane.xlu0 %401
        %v403 = vsub.f32 %v396, %v402
        %v404 = vmul.f32 %v403, 1.442695
        %v405 = vpow.pop %v404
        %v406 = vsel %vm399, %v405, 0.0
        %407 = vadd.xlane.f32.xlu0 %v406
        %v408 = vpop.xlane.xlu0 %407
        %v409 = vrcp.pop %v408
        %v410 = vmul.f32 %v405, %v409
        %v411 = vpack.c.bf16 %v410, %v410
        %vm412 = vcmask 60416
        %413 = vst.msk [vmem:[%s288] sm:$0xf] %vm412, %v411
        %s414 = sand.u32 %s155, 1
        %s415 = scalar_lea.sflag [#allocation5], %s414
        %s416 = sand.u32 %s155, 1
        %s417 = smul.addr %s416, 4
        %s418 = scalar_lea.vmem [#allocation9], %s417
        // Predicated region
        $region57: #{tpu_custom_call.1} parent=39 // pred_check
          %p419 = pneg %p165
        $region58: #{tpu_custom_call.1} parent=39 // pred_check_branch
          %421 = sbr.rel (%p419) target = $region60
        $region59: #{tpu_custom_call.1} parent=39 // pred_region
          %423 = vsyncadd %s415, 0
          %s424 = sadd.s32 %s28, %s27
          %s425 = smul.addr %s424, 4
          %s426 = scalar_lea.hbm %s5, %s425
          %s428 = sshll.u32 %s418, 4
          %s429 = int_to_ptr.vmem [resolvable:$true] %s428
          %s430 = sshll.u32 %s426, 4
          %s431 = int_to_ptr.hbm [resolvable:$true] %s430
          %433 = dma.vmem_to_hbm [thread:$0]  %s429, 64, %s431, %s415
        $region60: #{tpu_custom_call.1} parent=39 // pred_fallthru
          _
      $region40: #{tpu_custom_call.1} parent=5 // pred_fallthru
        _
      %p434 = scmp.le.s32.totalorder 2, %s18
      // Predicated region
      $region61: #{tpu_custom_call.1} parent=5 // pred_check
        %p435 = pneg %p434
      $region62: #{tpu_custom_call.1} parent=5 // pred_check_branch
        %437 = sbr.rel (%p435) target = $region64
      $region63: #{tpu_custom_call.1} parent=5 // pred_region
        %s438 = ssub.s32 %s18, 2
        // Predicated region
        $region65: #{tpu_custom_call.1} parent=63 // pred_check
          %p439 = pneg %p171
        $region66: #{tpu_custom_call.1} parent=63 // pred_check_branch
          %441 = sbr.rel (%p439) target = $region68
        $region67: #{tpu_custom_call.1} parent=63 // pred_region
          %s442 = sand.u32 %s156, 1
          %s443 = scalar_lea.sflag [#allocation5], %s442
          %s444 = sand.u32 %s156, 1
          %s445 = smul.addr %s444, 4
          %s446 = scalar_lea.vmem [#allocation9], %s445
          %448 = dma.done %s443, 64
        $region68: #{tpu_custom_call.1} parent=63 // pred_fallthru
          _
      $region64: #{tpu_custom_call.1} parent=5 // pred_fallthru
        _
    $region6: #{tpu_custom_call.1} parent=1 // loop_footer
      %s22 = sadd.s32 1, %s18
    $region7: #{tpu_custom_call.1} parent=1 // loop_footer_branch
      %17 = sbr.rel target = $region3
    $region8: #{tpu_custom_call.1} parent=1 // loop_exit
      _
    %449 = vsyncpa [#allocation4], 1
    %s450 = scalar_lea.sflag [#allocation4], 1
    %451 = vsyncpa %s450, 1
    %452 = vsyncpa [#allocation7], 1
    %453 = vsyncpa [#allocation5], 1
    %s454 = scalar_lea.sflag [#allocation5], 1
    %455 = vsyncpa %s454, 1

</llo_original>
